<compile_context>
chip_gen: v7x
topology: tpu7x:2x2x1
jax: 0.10.0
libtpu: 0.0.40
codegen_flags: <defaults>
</compile_context>

<pallas_src>
import jax
import jax.numpy as jnp
from jax.experimental import pallas as pl
from jax.experimental.pallas import tpu as pltpu


def _meanact_kernel(x_ref, o_ref):
    # exp on the EUP, clip on the VPU — both have large slack vs. HBM.
    o_ref[...] = jnp.clip(jnp.exp(x_ref[...]), 1e-05, 1e06).astype(o_ref.dtype)


def mean_act(x, *, target_block_bytes=2 * 1024 * 1024):
    """clamp(exp(x), 1e-5, 1e6), matching torch semantics/dtype/shape."""
    orig_shape = x.shape
    dtype = x.dtype
    n = x.size
    itemsize = jnp.dtype(dtype).itemsize
    # sublane multiple: 8 for 32-bit, 16 for 16-bit, 32 for 8-bit dtypes
    sub = 8 * (4 // itemsize) if itemsize in (1, 2, 4) else 8
    min_chunk = sub * 128

    # --- layout: flatten to a lane-dense 2-D slab --------------------------
    if n % min_chunk == 0:
        # Fast path: pure metadata reshape, zero extra HBM traffic.
        x_flat = x.reshape(-1)
        total = n
        padded = False
    else:
        # Awkward size: pad only up to the next (sub*128) boundary.
        # TODO(synk): a masked-tail kernel would avoid this extra copy.
        pad = min_chunk - (n % min_chunk)
        x_flat = jnp.pad(x.reshape(-1), (0, pad))
        total = n + pad
        padded = True

    # Widest lane dim (multiple of 128) that keeps rows a sublane multiple.
    lanes = 128
    for cand in (1024, 512, 256, 128):
        if total % (sub * cand) == 0:
            lanes = cand
            break
    rows = total // lanes
    x2d = x_flat.reshape(rows, lanes)

    # --- tiling: multi-MiB, sublane-aligned blocks, cdiv grid ---------------
    target_rows = max(sub, target_block_bytes // (lanes * itemsize))
    tile_rows = min(rows, (target_rows // sub) * sub)
    grid = (pl.cdiv(rows, tile_rows),)

    out2d = pl.pallas_call(
        _meanact_kernel,
        out_shape=jax.ShapeDtypeStruct((rows, lanes), dtype),
        grid_spec=pltpu.PrefetchScalarGridSpec(
            num_scalar_prefetch=0,
            grid=grid,
            in_specs=[pl.BlockSpec((tile_rows, lanes), lambda i: (i, 0))],
            out_specs=pl.BlockSpec((tile_rows, lanes), lambda i: (i, 0)),
        ),
        compiler_params=pltpu.CompilerParams(
            dimension_semantics=("parallel",)),
    )(x2d)

    if padded:
        return out2d.reshape(-1)[:n].reshape(orig_shape)
    return out2d.reshape(orig_shape)


if __name__ == "__main__":
    key = jax.random.PRNGKey(0)
    # NCHW input, same convention as the PyTorch module would receive.
    x = jax.random.normal(key, (2, 4, 16, 16), dtype=jnp.float32) * 3.0

    y = mean_act(x)
    jax.block_until_ready(y)

    # Reference check in plain JAX.
    y_ref = jnp.clip(jnp.exp(x), 1e-05, 1e06)
    assert y.shape == x.shape and y.dtype == x.dtype
    assert jnp.allclose(y, y_ref, rtol=1e-6, atol=1e-6), "mismatch vs reference"

    print("KERNEL_OK")
</pallas_src>

<mosaic_0001>
module attributes {stable_mosaic.version = 11 : i64} {
  func.func @_meanact_kernel(%arg0: i32, %arg1: memref<8x256xf32, #tpu.memory_space<vmem>>, %arg2: memref<8x256xf32, #tpu.memory_space<vmem>>) attributes {dimension_semantics = [#tpu.dimension_semantics<parallel>], iteration_bounds = array<i64: 1>, scalar_prefetch = 0 : i64, scratch_operands = 0 : i64, tpu.core_type = #tpu.core_type<tc>, window_params = [{transform_indices = @transform_0, window_bounds = array<i64: 8, 256>}, {transform_indices = @transform_1, window_bounds = array<i64: 8, 256>}]} {
    %c0 = arith.constant 0 : index
    %c0_0 = arith.constant 0 : index
    %0 = vector.load %arg1[%c0, %c0_0] : memref<8x256xf32, #tpu.memory_space<vmem>>, vector<8x256xf32>
    %1 = math.exp %0 : vector<8x256xf32>
    %cst = arith.constant 9.99999974E-6 : f32
    %cst_1 = arith.constant 1.000000e+06 : f32
    %2 = vector.broadcast %cst : f32 to vector<8x256xf32>
    %3 = arith.maximumf %2, %1 : vector<8x256xf32>
    %4 = vector.broadcast %cst_1 : f32 to vector<8x256xf32>
    %5 = arith.minimumf %4, %3 : vector<8x256xf32>
    %c0_2 = arith.constant 0 : index
    %c0_3 = arith.constant 0 : index
    %6 = vector.load %arg2[%c0_2, %c0_3] : memref<8x256xf32, #tpu.memory_space<vmem>>, vector<8x256xf32>
    tpu.vector_store %arg2[%c0_2, %c0_3], %5 {strides = array<i32>} : memref<8x256xf32, #tpu.memory_space<vmem>>, vector<8x256xf32>,
    return
  }
  func.func @transform_0(%arg0: i32) -> (i32, i32) {
    %c0_i32 = arith.constant 0 : i32
    %c0_i32_0 = arith.constant 0 : i32
    return %arg0, %c0_i32 : i32, i32
  }
  func.func @transform_1(%arg0: i32) -> (i32, i32) {
    %c0_i32 = arith.constant 0 : i32
    %c0_i32_0 = arith.constant 0 : i32
    return %arg0, %c0_i32 : i32, i32
  }
}

</mosaic_0001>

<llo_original>
// kernel: tpu_custom_call.1
$region0: #{tpu_custom_call.1}
  #allocation0 [shape = 'u32[]', space=smem, size = 0x4, offset = 0x4, fixed_abs, tag = 'smem constant byte address 0x4 - core index']
  #allocation1 [shape = 'u32[144,128]{1,0:T(1,128)}', space=vmem, size = 0x12000, scoped, tag = 'internal scratch']
  %s0 = inlined_call_operand.hbm [shape: f32[8,256], index: 0, kind: input, shape index: {}]
  %s1 = inlined_call_operand.hbm [shape: f32[8,256], index: 1, kind: output, shape index: {}]
  %s2 = sld [smem:[#allocation0]]
  $region18: #{tpu_custom_call.1} parent=0
    _
  %s4 = ssub.s32 1, %s2
  %s5 = scalar_select 0, %s4, %s2
  $region1: #{tpu_custom_call.1} parent=0
    #allocation2 [shape = 'u8[8192]{0}', space=vmem, size = 0x2000, scoped, tag = 'input window, operand 0, single buffered']
    #allocation3 [shape = 's32[1]{0}', space=sflag, size = 0x4, scoped, tag = 'scoped memory for tpu_custom_call.1']
    #allocation4 [shape = 's32[1]{0}', space=sflag, size = 0x4, scoped, tag = 'scoped memory for tpu_custom_call.1']
    #allocation5 [shape = 'u8[8192]{0}', space=vmem, size = 0x2000, scoped, tag = 'output window, operand 0, single buffered']
    %6 = vsyncpa [#allocation3], 0
    %7 = vsyncpa [#allocation4], 0
    // Predicated region
    $region2: #{tpu_custom_call.1} parent=1 // pred_check
      _
    $region3: #{tpu_custom_call.1} parent=1 // pred_check_branch
      %9 = sbr.rel (0) target = $region5
    $region4: #{tpu_custom_call.1} parent=1 // pred_region
      %s11 = ssub.s32 256, 256
      %12 = vsyncadd [#allocation3], %s11
      %s14 = sshll.u32 [#allocation2], 4
      %s15 = int_to_ptr.vmem [resolvable:$true] %s14
      %17 = dma.hbm_to_vmem [thread:$0]  %s0, 256, %s15, [#allocation3]
    $region5: #{tpu_custom_call.1} parent=1 // pred_fallthru
      _
    // Predicated region
    $region6: #{tpu_custom_call.1} parent=1 // pred_check
      _
    $region7: #{tpu_custom_call.1} parent=1 // pred_check_branch
      %19 = sbr.rel (0) target = $region9
    $region8: #{tpu_custom_call.1} parent=1 // pred_region
      %20 = dma.done [#allocation3], 256
    $region9: #{tpu_custom_call.1} parent=1 // pred_fallthru
      _
    %v21 = vld [vmem:[#allocation2] sm:$0xff]
    %v22 = vld [vmem:[#allocation2 + $0x8] sm:$0xff]
    %v23 = vmul.f32 %v21, 1.442695
    %v24 = vpow.pop %v23
    %v25 = vmul.f32 %v22, 1.442695
    %v26 = vpow.pop %v25
    %v27 = vmax.f32 %v24, 1e-05
    %v28 = vmax.f32 %v26, 1e-05
    %v29 = vmin.f32 %v27, 1000000.0
    %v30 = vmin.f32 %v28, 1000000.0
    %31 = vst [vmem:[#allocation5] sm:$0xff] %v29
    %32 = vst [vmem:[#allocation5 + $0x8] sm:$0xff] %v30
    // Predicated region
    $region10: #{tpu_custom_call.1} parent=1 // pred_check
      _
    $region11: #{tpu_custom_call.1} parent=1 // pred_check_branch
      %34 = sbr.rel (0) target = $region13
    $region12: #{tpu_custom_call.1} parent=1 // pred_region
      %s36 = ssub.s32 256, 256
      %37 = vsyncadd [#allocation4], %s36
      %s39 = sshll.u32 [#allocation5], 4
      %s40 = int_to_ptr.vmem [resolvable:$true] %s39
      %42 = dma.vmem_to_hbm [thread:$0]  %s40, 256, %s1, [#allocation4]
    $region13: #{tpu_custom_call.1} parent=1 // pred_fallthru
      _
    // Predicated region
    $region14: #{tpu_custom_call.1} parent=1 // pred_check
      _
    $region15: #{tpu_custom_call.1} parent=1 // pred_check_branch
      %44 = sbr.rel (0) target = $region17
    $region16: #{tpu_custom_call.1} parent=1 // pred_region
      %45 = dma.done [#allocation4], 256
    $region17: #{tpu_custom_call.1} parent=1 // pred_fallthru
      _
    %46 = vsyncpa [#allocation3], 1
    %47 = vsyncpa [#allocation4], 1

</llo_original>
